<compile_context>
chip_gen: v5e
topology: v5e:2x2
jax: 0.10.0
libtpu: 0.0.40
codegen_flags: <defaults>
</compile_context>

<pallas_src>
import jax
import jax.numpy as jnp
from jax.experimental import pallas as pl
from jax.experimental.pallas import tpu as pltpu


def _outconv_kernel(x_ref, w_ref, b_ref, o_ref):
    # x_ref: (C_in, TN)   w_ref: (C_out, C_in)   b_ref: (C_out, 1)   o_ref: (C_out, TN)
    acc = jnp.dot(w_ref[...], x_ref[...], preferred_element_type=jnp.float32)
    o_ref[...] = (acc + b_ref[...]).astype(o_ref.dtype)


def outconv_pallas(x_ncdhw, weight, bias, *, tn_target=2048):
    """1x1x1 Conv3d forward (channels-first, no wrapper transposes).

    x_ncdhw: (N, C_in, D, H, W) float32
    weight : (C_out, C_in, 1, 1, 1)  (PyTorch Conv3d layout)
    bias   : (C_out,)
    returns: (N, C_out, D, H, W)
    """
    N, C_in, D, H, W = x_ncdhw.shape
    C_out = weight.shape[0]
    S = D * H * W

    # Free reshapes (contiguous), no data movement.
    x_flat = x_ncdhw.reshape(N, C_in, S)                       # (N, C_in, S)
    w2d = weight.reshape(C_out, C_in).astype(x_flat.dtype)     # (C_out, C_in)
    b2d = bias.reshape(C_out, 1).astype(x_flat.dtype)          # (C_out, 1)

    # Lane tile: full S if small (always layout-legal), else a 128-multiple.
    assert tn_target % 128 == 0
    tn = S if S <= tn_target else tn_target

    grid = (N, pl.cdiv(S, tn))

    out_flat = pl.pallas_call(
        _outconv_kernel,
        out_shape=jax.ShapeDtypeStruct((N, C_out, S), x_flat.dtype),
        grid_spec=pltpu.PrefetchScalarGridSpec(
            num_scalar_prefetch=0,
            grid=grid,
            in_specs=[
                # x tile: batch dim squeezed, full C_in, TN lanes of spatial.
                pl.BlockSpec((None, C_in, tn), lambda n, j: (n, 0, j)),
                # Resident weight / bias (constant index_map -> loaded once).
                pl.BlockSpec((C_out, C_in), lambda n, j: (0, 0)),
                pl.BlockSpec((C_out, 1), lambda n, j: (0, 0)),
            ],
            out_specs=pl.BlockSpec((None, C_out, tn), lambda n, j: (n, 0, j)),
        ),
        compiler_params=pltpu.CompilerParams(
            dimension_semantics=("parallel", "parallel"),
        ),
    )(x_flat, w2d, b2d)

    return out_flat.reshape(N, C_out, D, H, W)


if __name__ == "__main__":
    key = jax.random.PRNGKey(0)
    k_x, k_w, k_b = jax.random.split(key, 3)

    N, C_in, C_out = 2, 4, 3
    D, H, W = 8, 16, 16

    x = jax.random.normal(k_x, (N, C_in, D, H, W), dtype=jnp.float32)
    # Deterministic synthetic Conv3d(in_ch, out_ch, 1) parameters.
    weight = jax.random.normal(k_w, (C_out, C_in, 1, 1, 1), dtype=jnp.float32) * 0.1
    bias = jax.random.normal(k_b, (C_out,), dtype=jnp.float32) * 0.1

    out = outconv_pallas(x, weight, bias)
    out = jax.block_until_ready(out)

    # Reference in plain JAX (same math as nn.Conv3d with kernel_size=1).
    ref = (
        jnp.einsum("ncdhw,oc->nodhw", x, weight.reshape(C_out, C_in))
        + bias[None, :, None, None, None]
    )
    assert out.shape == (N, C_out, D, H, W), out.shape
    assert jnp.allclose(out, ref, atol=1e-5, rtol=1e-5), "mismatch vs reference"

    print("KERNEL_OK")
</pallas_src>

<mosaic_0001>
module attributes {stable_mosaic.version = 11 : i64} {
  func.func @_outconv_kernel(%arg0: i32, %arg1: i32, %arg2: memref<1x4x2048xf32, #tpu.memory_space<vmem>>, %arg3: memref<3x4xf32, #tpu.memory_space<vmem>>, %arg4: memref<3x1xf32, #tpu.memory_space<vmem>>, %arg5: memref<1x3x2048xf32, #tpu.memory_space<vmem>>) attributes {dimension_semantics = [#tpu.dimension_semantics<parallel>, #tpu.dimension_semantics<parallel>], iteration_bounds = array<i64: 2, 1>, scalar_prefetch = 0 : i64, scratch_operands = 0 : i64, tpu.core_type = #tpu.core_type<tc>, window_params = [{transform_indices = @transform_0, window_bounds = array<i64: 1, 4, 2048>}, {pipeline_mode = #tpu.pipeline_mode<synchronous>, transform_indices = @transform_1, window_bounds = array<i64: 3, 4>}, {pipeline_mode = #tpu.pipeline_mode<synchronous>, transform_indices = @transform_2, window_bounds = array<i64: 3, 1>}, {transform_indices = @transform_3, window_bounds = array<i64: 1, 3, 2048>}]} {
    %c0 = arith.constant 0 : index
    %c0_0 = arith.constant 0 : index
    %0 = vector.load %arg3[%c0, %c0_0] : memref<3x4xf32, #tpu.memory_space<vmem>>, vector<3x4xf32>
    %c0_1 = arith.constant 0 : index
    %c0_2 = arith.constant 0 : index
    %c0_3 = arith.constant 0 : index
    %1 = vector.load %arg2[%c0_1, %c0_2, %c0_3] : memref<1x4x2048xf32, #tpu.memory_space<vmem>>, vector<1x4x2048xf32>
    %2 = vector.shape_cast %1 : vector<1x4x2048xf32> to vector<4x2048xf32>
    %cst = arith.constant dense<0.000000e+00> : vector<3x2048xf32>
    %3 = tpu.matmul %0, %2, %cst {dimension_numbers = #tpu.dot_dimension_numbers<[1], [0], [0], [1], [0, 0, 1, 1], [], []>} : vector<3x4xf32>, vector<4x2048xf32>, vector<3x2048xf32> -> vector<3x2048xf32>
    %c0_4 = arith.constant 0 : index
    %c0_5 = arith.constant 0 : index
    %4 = vector.load %arg4[%c0_4, %c0_5] : memref<3x1xf32, #tpu.memory_space<vmem>>, vector<3x1xf32>
    %5 = vector.broadcast %4 : vector<3x1xf32> to vector<3x2048xf32>
    %6 = arith.addf %3, %5 : vector<3x2048xf32>
    %c0_6 = arith.constant 0 : index
    %c0_7 = arith.constant 0 : index
    %c0_8 = arith.constant 0 : index
    %7 = vector.load %arg5[%c0_6, %c0_7, %c0_8] : memref<1x3x2048xf32, #tpu.memory_space<vmem>>, vector<1x3x2048xf32>
    %8 = vector.shape_cast %7 : vector<1x3x2048xf32> to vector<3x2048xf32>
    %9 = vector.shape_cast %6 : vector<3x2048xf32> to vector<1x3x2048xf32>
    tpu.vector_store %arg5[%c0_6, %c0_7, %c0_8], %9 {strides = array<i32>} : memref<1x3x2048xf32, #tpu.memory_space<vmem>>, vector<1x3x2048xf32>,
    return
  }
  func.func @transform_0(%arg0: i32, %arg1: i32) -> (i32, i32, i32) {
    %c0_i32 = arith.constant 0 : i32
    %c0_i32_0 = arith.constant 0 : i32
    return %arg0, %c0_i32, %arg1 : i32, i32, i32
  }
  func.func @transform_1(%arg0: i32, %arg1: i32) -> (i32, i32) {
    %c0_i32 = arith.constant 0 : i32
    %c0_i32_0 = arith.constant 0 : i32
    %c0_i32_1 = arith.constant 0 : i32
    return %c0_i32, %c0_i32_0 : i32, i32
  }
  func.func @transform_2(%arg0: i32, %arg1: i32) -> (i32, i32) {
    %c0_i32 = arith.constant 0 : i32
    %c0_i32_0 = arith.constant 0 : i32
    %c0_i32_1 = arith.constant 0 : i32
    return %c0_i32, %c0_i32_0 : i32, i32
  }
  func.func @transform_3(%arg0: i32, %arg1: i32) -> (i32, i32, i32) {
    %c0_i32 = arith.constant 0 : i32
    %c0_i32_0 = arith.constant 0 : i32
    return %arg0, %c0_i32, %arg1 : i32, i32, i32
  }
}

</mosaic_0001>

<llo_original>
// kernel: tpu_custom_call.1
$region0: #{tpu_custom_call.1}
  #allocation0 [shape = 'u32[]', space=smem, size = 0x4, offset = 0x4, fixed_abs, tag = 'smem constant byte address 0x4 - core index']
  #allocation1 [shape = 'u32[72,128]{1,0:T(1,128)}', space=vmem, size = 0x9000, scoped, tag = 'internal scratch']
  %s0 = inlined_call_operand.hbm [shape: f32[2,4,2048], index: 0, kind: input, shape index: {}]
  %s1 = inlined_call_operand.vmem [shape: f32[3,4], index: 1, kind: input, shape index: {}]
  %s2 = inlined_call_operand.vmem [shape: f32[3,1], index: 2, kind: input, shape index: {}]
  %s3 = inlined_call_operand.vmem [shape: f32[2,3,2048], index: 3, kind: output, shape index: {}]
  %s4 = sld [smem:[#allocation0]]
  $region49: #{tpu_custom_call.1} parent=0
    _
  %s6 = ssub.s32 1, %s4
  %s7 = scalar_select 0, %s6, %s4
  $region1: #{tpu_custom_call.1} parent=0
    #allocation2 [shape = 'u8[65536]{0}', space=vmem, size = 0x10000, scoped, tag = 'input window, operand 0']
    #allocation3 [shape = 's32[2]{0}', space=sflag, size = 0x8, scoped, tag = 'scoped memory for tpu_custom_call.1']
    %8 = vsyncpa [#allocation3], 0
    %s9 = scalar_lea.sflag [#allocation3], 1
    %10 = vsyncpa %s9, 0
    loop: start=0, step=1, limit=4
    $region2: #{tpu_custom_call.1} parent=1 // loop_pre_header
      _
    $region3: #{tpu_custom_call.1} parent=1 // loop_header
      %s12 = sphi 0, %s16
      %p13 = scmp.ge.s32.totalorder %s12, 4
      %s19 = sphi 0, %s31
      %s20 = sphi 0, %s27
      %s21 = sphi 0, %s19
      %s22 = sphi 0, %s20
      %s23 = sphi 0, %s21
      %s24 = sphi 0, %s22
      %s36 = sphi 0, %s38
      %s39 = sphi 0, %s36
      %s40 = sphi 0, %s39
      %s56 = sphi 0, %s40
      %s60 = sphi 0, %s60
      %s62 = sphi 0, %s60
      %s63 = sphi 0, %s62
      %s77 = sphi 0, %s63
      %s81 = sphi 0, %s81
      %s83 = sphi 0, %s81
      %s84 = sphi 0, %s83
      %s98 = sphi 0, %s84
      %s106 = sphi 0, %s108
      %s109 = sphi 0, %s106
      %s110 = sphi 0, %s109
      %s126 = sphi 0, %s110
    $region4: #{tpu_custom_call.1} parent=1 // loop_header_branch
      %15 = sbr.rel (%p13) target = $region8
    $region5: #{tpu_custom_call.1} parent=1 // loop_body
      %s17 = ssub.s32 %s12, 1
      %s18 = ssub.s32 %s12, 2
      %s25 = sadd.s32 1, %s20
      %p26 = scmp.ge.s32.totalorder %s25, 1
      %s27 = scalar_select %p26, 0, %s25
      %s28 = sadd.s32 1, %s19
      %s29 = scalar_select %p26, %s28, %s19
      %p30 = scmp.ge.s32.totalorder %s29, 2
      %s31 = scalar_select %p30, 0, %s29
      %s32 = ssub.s32 %s19, %s31
      %s33 = ssub.s32 %s20, %s27
      %s34 = sor.u32 %s32, %s33
      %p35 = scmp.eq.s32.totalorder %s34, 0
      %s37 = sadd.s32 %s36, 1
      %s38 = scalar_select %p35, %s36, %s37
      %p41 = pneg %p35
      %p42 = scmp.eq.s32.totalorder %s12, 1
      %p43 = por %p41, %p42
      %p44 = scmp.ne.s32.totalorder %s36, %s39
      %p45 = scmp.eq.s32.totalorder %s12, 0
      %p46 = por %p44, %p45
      %p47 = scmp.ne.s32.totalorder %s36, %s39
      %p48 = scmp.eq.s32.totalorder %s17, 1
      %p49 = por %p47, %p48
      %p50 = scmp.ne.s32.totalorder %s39, %s40
      %p51 = scmp.eq.s32.totalorder %s17, 0
      %p52 = por %p50, %p51
      %p53 = scmp.ne.s32.totalorder %s39, %s40
      %p54 = scmp.eq.s32.totalorder %s18, 1
      %p55 = por %p53, %p54
      %p57 = scmp.ne.s32.totalorder %s40, %s56
      %p58 = scmp.eq.s32.totalorder %s18, 0
      %p59 = por %p57, %p58
      %s61 = sadd.s32 %s60, 1
      %p64 = scmp.eq.s32.totalorder %s12, 1
      %p65 = scmp.ne.s32.totalorder %s60, %s62
      %p66 = scmp.eq.s32.totalorder %s12, 0
      %p67 = por %p65, %p66
      %p68 = scmp.ne.s32.totalorder %s60, %s62
      %p69 = scmp.eq.s32.totalorder %s17, 1
      %p70 = por %p68, %p69
      %p71 = scmp.ne.s32.totalorder %s62, %s63
      %p72 = scmp.eq.s32.totalorder %s17, 0
      %p73 = por %p71, %p72
      %p74 = scmp.ne.s32.totalorder %s62, %s63
      %p75 = scmp.eq.s32.totalorder %s18, 1
      %p76 = por %p74, %p75
      %p78 = scmp.ne.s32.totalorder %s63, %s77
      %p79 = scmp.eq.s32.totalorder %s18, 0
      %p80 = por %p78, %p79
      %s82 = sadd.s32 %s81, 1
      %p85 = scmp.eq.s32.totalorder %s12, 1
      %p86 = scmp.ne.s32.totalorder %s81, %s83
      %p87 = scmp.eq.s32.totalorder %s12, 0
      %p88 = por %p86, %p87
      %p89 = scmp.ne.s32.totalorder %s81, %s83
      %p90 = scmp.eq.s32.totalorder %s17, 1
      %p91 = por %p89, %p90
      %p92 = scmp.ne.s32.totalorder %s83, %s84
      %p93 = scmp.eq.s32.totalorder %s17, 0
      %p94 = por %p92, %p93
      %p95 = scmp.ne.s32.totalorder %s83, %s84
      %p96 = scmp.eq.s32.totalorder %s18, 1
      %p97 = por %p95, %p96
      %p99 = scmp.ne.s32.totalorder %s84, %s98
      %p100 = scmp.eq.s32.totalorder %s18, 0
      %p101 = por %p99, %p100
      %s102 = ssub.s32 %s19, %s31
      %s103 = ssub.s32 %s20, %s27
      %s104 = sor.u32 %s102, %s103
      %p105 = scmp.eq.s32.totalorder %s104, 0
      %s107 = sadd.s32 %s106, 1
      %s108 = scalar_select %p105, %s106, %s107
      %p111 = pneg %p105
      %p112 = scmp.eq.s32.totalorder %s12, 1
      %p113 = por %p111, %p112
      %p114 = scmp.ne.s32.totalorder %s106, %s109
      %p115 = scmp.eq.s32.totalorder %s12, 0
      %p116 = por %p114, %p115
      %p117 = scmp.ne.s32.totalorder %s106, %s109
      %p118 = scmp.eq.s32.totalorder %s17, 1
      %p119 = por %p117, %p118
      %p120 = scmp.ne.s32.totalorder %s109, %s110
      %p121 = scmp.eq.s32.totalorder %s17, 0
      %p122 = por %p120, %p121
      %p123 = scmp.ne.s32.totalorder %s109, %s110
      %p124 = scmp.eq.s32.totalorder %s18, 1
      %p125 = por %p123, %p124
      %p127 = scmp.ne.s32.totalorder %s110, %s126
      %p128 = scmp.eq.s32.totalorder %s18, 0
      %p129 = por %p127, %p128
      %p130 = scmp.le.s32.totalorder 1, %s12
      %p131 = scmp.lt.s32.totalorder %s12, 3
      %p132 = pnand %p130, %p131
      %p133 = pneg %p132
      // Predicated region
      $region9: #{tpu_custom_call.1} parent=5 // pred_check
        _
      $region10: #{tpu_custom_call.1} parent=5 // pred_check_branch
        %135 = sbr.rel (%p132) target = $region12
      $region11: #{tpu_custom_call.1} parent=5 // pred_region
        %s136 = ssub.s32 %s12, 1
        // Predicated region
        $region13: #{tpu_custom_call.1} parent=11 // pred_check
          %p137 = pneg %p73
        $region14: #{tpu_custom_call.1} parent=11 // pred_check_branch
          %139 = sbr.rel (%p137) target = $region16
        $region15: #{tpu_custom_call.1} parent=11 // pred_region
          _
        $region16: #{tpu_custom_call.1} parent=11 // pred_fallthru
          _
        // Predicated region
        $region17: #{tpu_custom_call.1} parent=11 // pred_check
          %p140 = pneg %p94
        $region18: #{tpu_custom_call.1} parent=11 // pred_check_branch
          %142 = sbr.rel (%p140) target = $region20
        $region19: #{tpu_custom_call.1} parent=11 // pred_region
          _
        $region20: #{tpu_custom_call.1} parent=11 // pred_fallthru
          _
      $region12: #{tpu_custom_call.1} parent=5 // pred_fallthru
        _
      %p143 = scmp.lt.s32.totalorder %s12, 2
      // Predicated region
      $region21: #{tpu_custom_call.1} parent=5 // pred_check
        %p144 = pneg %p143
      $region22: #{tpu_custom_call.1} parent=5 // pred_check_branch
        %146 = sbr.rel (%p144) target = $region24
      $region23: #{tpu_custom_call.1} parent=5 // pred_region
        // Predicated region
        $region25: #{tpu_custom_call.1} parent=23 // pred_check
          %p147 = pneg %p46
        $region26: #{tpu_custom_call.1} parent=23 // pred_check_branch
          %149 = sbr.rel (%p147) target = $region28
        $region27: #{tpu_custom_call.1} parent=23 // pred_region
          %s150 = sand.u32 %s36, 1
          %s151 = scalar_lea.sflag [#allocation3], %s150
          %s152 = sand.u32 %s36, 1
          %s153 = smul.addr %s152, 64
          %s154 = scalar_lea.vmem [#allocation2], %s153
          %s155 = smul.u32 16, %s20
          %157 = vsyncadd %s151, 0
          %s158 = smul.addr %s19, 16
          %s159 = sadd.s32 %s155, %s158
          %s160 = smul.addr %s159, 4
          %s161 = scalar_lea.hbm %s0, %s160
          %s163 = sshll.u32 %s161, 4
          %s164 = int_to_ptr.hbm [resolvable:$true] %s163
          %s165 = sshll.u32 %s154, 4
          %s166 = int_to_ptr.vmem [resolvable:$true] %s165
          %168 = dma.hbm_to_vmem [thread:$0]  %s164, 1024, %s166, %s151
        $region28: #{tpu_custom_call.1} parent=23 // pred_fallthru
          _
      $region24: #{tpu_custom_call.1} parent=5 // pred_fallthru
        _
      %p169 = scmp.le.s32.totalorder 1, %s12
      %p170 = scmp.lt.s32.totalorder %s12, 3
      %p171 = pnand %p169, %p170
      %p172 = pneg %p171
      // Predicated region
      $region29: #{tpu_custom_call.1} parent=5 // pred_check
        _
      $region30: #{tpu_custom_call.1} parent=5 // pred_check_branch
        %174 = sbr.rel (%p171) target = $region32
      $region31: #{tpu_custom_call.1} parent=5 // pred_region
        %s175 = ssub.s32 %s12, 1
        %s176 = sand.u32 %s39, 1
        %s177 = scalar_lea.sflag [#allocation3], %s176
        %s178 = sand.u32 %s39, 1
        %s179 = smul.addr %s178, 64
        %s180 = scalar_lea.vmem [#allocation2], %s179
        // Predicated region
        $region33: #{tpu_custom_call.1} parent=31 // pred_check
          %p181 = pneg %p52
        $region34: #{tpu_custom_call.1} parent=31 // pred_check_branch
          %183 = sbr.rel (%p181) target = $region36
        $region35: #{tpu_custom_call.1} parent=31 // pred_region
          %185 = dma.done %s177, 1024
        $region36: #{tpu_custom_call.1} parent=31 // pred_fallthru
          _
        %s186 = sand.u32 %s39, 1
        %s187 = scalar_lea.sflag [#allocation3], %s186
        %s188 = sand.u32 %s39, 1
        %s189 = smul.addr %s188, 64
        %s190 = scalar_lea.vmem [#allocation2], %s189
        %p191 = pneg %p52
        %p192 = pneg %p49
        %p193 = pneg %p73
        %p194 = pneg %p70
        %p195 = pneg %p94
        %p196 = pneg %p91
        %p197 = pneg %p122
        %p198 = pneg %p119
        %s199 = smul.u32 16, %s22
        %p200 = scmp.lt.s32.totalorder %s21, 1
        %s201 = scalar_select %p200, %s21, 1
        %p202 = scmp.lt.s32.totalorder %s199, 15
        %s203 = scalar_select %p202, %s199, 15
        %s204 = smul.addr %s201, 16
        %s205 = sadd.s32 %s203, %s204
        %s206 = smul.addr %s205, 4
        %s207 = scalar_lea.vmem %s3, %s206
        %s208 = smul.u32 16, %s22
        %s209 = smul.u32 16, %s22
        %p210 = scmp.lt.s32.totalorder %s21, 1
        %s211 = scalar_select %p210, %s21, 1
        %p212 = scmp.lt.s32.totalorder %s209, 15
        %s213 = scalar_select %p212, %s209, 15
        %s214 = smul.addr %s211, 16
        %s215 = sadd.s32 %s213, %s214
        %s216 = smul.addr %s215, 4
        %s217 = scalar_lea.vmem %s3, %s216
        %s218 = smul.u32 16, %s22
        %v219 = vld [vmem:[%s1] sm:$0x7]
        %v220 = vld [vmem:[%s180] sm:$0xff]
        %v221 = vld [vmem:[%s180 + $0x8] sm:$0xff]
        %v222 = vld [vmem:[%s180 + $0x10] sm:$0xff]
        %v223 = vld [vmem:[%s180 + $0x18] sm:$0xff]
        %v224 = vld [vmem:[%s180 + $0x20] sm:$0xff]
        %v225 = vld [vmem:[%s180 + $0x28] sm:$0xff]
        %v226 = vld [vmem:[%s180 + $0x30] sm:$0xff]
        %v227 = vld [vmem:[%s180 + $0x38] sm:$0xff]
        %v228 = vld [vmem:[%s2] sm:$0x7]
        %230 = vset.pattern.permute.xlu0 0
        %231 = vperm.xlu0 %230, %v228
        %v232 = vpop.permute.xlu0 %231
        %242 = vst [vmem:[#allocation1] ss:$2 sm:$0xff] %v220
        %s243 = scalar_lea.vmem [#allocation1], 16
        %244 = vst [vmem:[%s243] ss:$2 sm:$0xff] %v221
        %s245 = scalar_lea.vmem [#allocation1], 32
        %246 = vst [vmem:[%s245] ss:$2 sm:$0xff] %v222
        %s247 = scalar_lea.vmem [#allocation1], 48
        %248 = vst [vmem:[%s247] ss:$2 sm:$0xff] %v223
        %v249 = vld.sshfl [vmem:[#allocation1] sm:$0xff pattern:$0x75316420]
        %v250 = vld.sshfl [vmem:[#allocation1 + $0x8] sm:$0xff pattern:$0x75316420]
        %v251 = vld.sshfl [vmem:[#allocation1 + $0x10] sm:$0xff pattern:$0x75316420]
        %v252 = vld.sshfl [vmem:[#allocation1 + $0x18] sm:$0xff pattern:$0x75316420]
        %v253 = vld.sshfl [vmem:[#allocation1 + $0x20] sm:$0xff pattern:$0x75316420]
        %v254 = vld.sshfl [vmem:[#allocation1 + $0x28] sm:$0xff pattern:$0x75316420]
        %v255 = vld.sshfl [vmem:[#allocation1 + $0x30] sm:$0xff pattern:$0x75316420]
        %v256 = vld.sshfl [vmem:[#allocation1 + $0x38] sm:$0xff pattern:$0x75316420]
        %257 = vst [vmem:[#allocation1] ss:$2 sm:$0xff] %v224
        %258 = vst [vmem:[%s243] ss:$2 sm:$0xff] %v225
        %259 = vst [vmem:[%s245] ss:$2 sm:$0xff] %v226
        %260 = vst [vmem:[%s247] ss:$2 sm:$0xff] %v227
        %v261 = vld.sshfl [vmem:[#allocation1] sm:$0xff pattern:$0x75316420]
        %v262 = vld.sshfl [vmem:[#allocation1 + $0x8] sm:$0xff pattern:$0x75316420]
        %v263 = vld.sshfl [vmem:[#allocation1 + $0x10] sm:$0xff pattern:$0x75316420]
        %v264 = vld.sshfl [vmem:[#allocation1 + $0x18] sm:$0xff pattern:$0x75316420]
        %v265 = vld.sshfl [vmem:[#allocation1 + $0x20] sm:$0xff pattern:$0x75316420]
        %v266 = vld.sshfl [vmem:[#allocation1 + $0x28] sm:$0xff pattern:$0x75316420]
        %v267 = vld.sshfl [vmem:[#allocation1 + $0x30] sm:$0xff pattern:$0x75316420]
        %v268 = vld.sshfl [vmem:[#allocation1 + $0x38] sm:$0xff pattern:$0x75316420]
        %vm269 = vcmask 31744
        %v271 = vsel %vm269, %v219, 0
        %vm273 = vcmask 1043456
        %v274 = vsel %vm273, %v249, 0
        %v276 = vsel %vm273, %v250, 0
        %v278 = vsel %vm273, %v251, 0
        %v280 = vsel %vm273, %v252, 0
        %v282 = vsel %vm273, %v253, 0
        %v284 = vsel %vm273, %v254, 0
        %v286 = vsel %vm273, %v255, 0
        %v288 = vsel %vm273, %v256, 0
        %v290 = vsel %vm273, %v261, 0
        %v292 = vsel %vm273, %v262, 0
        %v294 = vsel %vm273, %v263, 0
        %v296 = vsel %vm273, %v264, 0
        %v298 = vsel %vm273, %v265, 0
        %v300 = vsel %vm273, %v266, 0
        %v302 = vsel %vm273, %v267, 0
        %v304 = vsel %vm273, %v268, 0
        %306 = vmatpush.msra.mxu0 0.0
        %307 = vmatpush.msra.mxu0 0.0
        %308 = vmatpush.msra.mxu0 0.0
        %309 = vmatpush.msra.mxu0 0.0
        %310 = vmatpush.msra.mxu0 0.0
        %311 = vmatpush.msra.mxu0 0.0
        %312 = vmatpush.msra.mxu0 0.0
        %313 = vmatpush.msra.mxu0 0.0
        %314 = vmatpush.msra.mxu0 0.0
        %315 = vmatpush.msra.mxu0 0.0
        %316 = vmatpush.msra.mxu0 0.0
        %317 = vmatpush.msra.mxu0 0.0
        %318 = vmatpush.msra.mxu0 0.0
        %319 = vmatpush.msra.mxu0 0.0
        %320 = vmatpush.msra.mxu0 0.0
        %321 = vmatpush.msra.mxu0 %v274
        %322 = vmatmul.f32.gmra.mxu0 %v271
        %v323 = vpop.f32.mrf.mxu0
        %v324 = vadd.f32 %v232, %v323
        %325 = vdwg.mxu0
        %326 = vmatpush.msra.mxu0 0.0
        %327 = vmatpush.msra.mxu0 0.0
        %328 = vmatpush.msra.mxu0 0.0
        %329 = vmatpush.msra.mxu0 0.0
        %330 = vmatpush.msra.mxu0 0.0
        %331 = vmatpush.msra.mxu0 0.0
        %332 = vmatpush.msra.mxu0 0.0
        %333 = vmatpush.msra.mxu0 0.0
        %334 = vmatpush.msra.mxu0 0.0
        %335 = vmatpush.msra.mxu0 0.0
        %336 = vmatpush.msra.mxu0 0.0
        %337 = vmatpush.msra.mxu0 0.0
        %338 = vmatpush.msra.mxu0 0.0
        %339 = vmatpush.msra.mxu0 0.0
        %340 = vmatpush.msra.mxu0 0.0
        %341 = vmatpush.msra.mxu0 %v276
        %342 = vmatmul.f32.gmra.mxu0 %v271
        %v343 = vpop.f32.mrf.mxu0
        %v344 = vadd.f32 %v232, %v343
        %345 = vdwg.mxu0
        %346 = vmatpush.msra.mxu0 0.0
        %347 = vmatpush.msra.mxu0 0.0
        %348 = vmatpush.msra.mxu0 0.0
        %349 = vmatpush.msra.mxu0 0.0
        %350 = vmatpush.msra.mxu0 0.0
        %351 = vmatpush.msra.mxu0 0.0
        %352 = vmatpush.msra.mxu0 0.0
        %353 = vmatpush.msra.mxu0 0.0
        %354 = vmatpush.msra.mxu0 0.0
        %355 = vmatpush.msra.mxu0 0.0
        %356 = vmatpush.msra.mxu0 0.0
        %357 = vmatpush.msra.mxu0 0.0
        %358 = vmatpush.msra.mxu0 0.0
        %359 = vmatpush.msra.mxu0 0.0
        %360 = vmatpush.msra.mxu0 0.0
        %361 = vmatpush.msra.mxu0 %v278
        %362 = vmatmul.f32.gmra.mxu0 %v271
        %v363 = vpop.f32.mrf.mxu0
        %v364 = vadd.f32 %v232, %v363
        %365 = vdwg.mxu0
        %366 = vmatpush.msra.mxu0 0.0
        %367 = vmatpush.msra.mxu0 0.0
        %368 = vmatpush.msra.mxu0 0.0
        %369 = vmatpush.msra.mxu0 0.0
        %370 = vmatpush.msra.mxu0 0.0
        %371 = vmatpush.msra.mxu0 0.0
        %372 = vmatpush.msra.mxu0 0.0
        %373 = vmatpush.msra.mxu0 0.0
        %374 = vmatpush.msra.mxu0 0.0
        %375 = vmatpush.msra.mxu0 0.0
        %376 = vmatpush.msra.mxu0 0.0
        %377 = vmatpush.msra.mxu0 0.0
        %378 = vmatpush.msra.mxu0 0.0
        %379 = vmatpush.msra.mxu0 0.0
        %380 = vmatpush.msra.mxu0 0.0
        %381 = vmatpush.msra.mxu0 %v280
        %382 = vmatmul.f32.gmra.mxu0 %v271
        %v383 = vpop.f32.mrf.mxu0
        %v384 = vadd.f32 %v232, %v383
        %385 = vdwg.mxu0
        %386 = vmatpush.msra.mxu0 0.0
        %387 = vmatpush.msra.mxu0 0.0
        %388 = vmatpush.msra.mxu0 0.0
        %389 = vmatpush.msra.mxu0 0.0
        %390 = vmatpush.msra.mxu0 0.0
        %391 = vmatpush.msra.mxu0 0.0
        %392 = vmatpush.msra.mxu0 0.0
        %393 = vmatpush.msra.mxu0 0.0
        %394 = vmatpush.msra.mxu0 0.0
        %395 = vmatpush.msra.mxu0 0.0
        %396 = vmatpush.msra.mxu0 0.0
        %397 = vmatpush.msra.mxu0 0.0
        %398 = vmatpush.msra.mxu0 0.0
        %399 = vmatpush.msra.mxu0 0.0
        %400 = vmatpush.msra.mxu0 0.0
        %401 = vmatpush.msra.mxu0 %v282
        %402 = vmatmul.f32.gmra.mxu0 %v271
        %v403 = vpop.f32.mrf.mxu0
        %v404 = vadd.f32 %v232, %v403
        %405 = vdwg.mxu0
        %406 = vmatpush.msra.mxu0 0.0
        %407 = vmatpush.msra.mxu0 0.0
        %408 = vmatpush.msra.mxu0 0.0
        %409 = vmatpush.msra.mxu0 0.0
        %410 = vmatpush.msra.mxu0 0.0
        %411 = vmatpush.msra.mxu0 0.0
        %412 = vmatpush.msra.mxu0 0.0
        %413 = vmatpush.msra.mxu0 0.0
        %414 = vmatpush.msra.mxu0 0.0
        %415 = vmatpush.msra.mxu0 0.0
        %416 = vmatpush.msra.mxu0 0.0
        %417 = vmatpush.msra.mxu0 0.0
        %418 = vmatpush.msra.mxu0 0.0
        %419 = vmatpush.msra.mxu0 0.0
        %420 = vmatpush.msra.mxu0 0.0
        %421 = vmatpush.msra.mxu0 %v284
        %422 = vmatmul.f32.gmra.mxu0 %v271
        %v423 = vpop.f32.mrf.mxu0
        %v424 = vadd.f32 %v232, %v423
        %425 = vdwg.mxu0
        %426 = vmatpush.msra.mxu0 0.0
        %427 = vmatpush.msra.mxu0 0.0
        %428 = vmatpush.msra.mxu0 0.0
        %429 = vmatpush.msra.mxu0 0.0
        %430 = vmatpush.msra.mxu0 0.0
        %431 = vmatpush.msra.mxu0 0.0
        %432 = vmatpush.msra.mxu0 0.0
        %433 = vmatpush.msra.mxu0 0.0
        %434 = vmatpush.msra.mxu0 0.0
        %435 = vmatpush.msra.mxu0 0.0
        %436 = vmatpush.msra.mxu0 0.0
        %437 = vmatpush.msra.mxu0 0.0
        %438 = vmatpush.msra.mxu0 0.0
        %439 = vmatpush.msra.mxu0 0.0
        %440 = vmatpush.msra.mxu0 0.0
        %441 = vmatpush.msra.mxu0 %v286
        %442 = vmatmul.f32.gmra.mxu0 %v271
        %v443 = vpop.f32.mrf.mxu0
        %v444 = vadd.f32 %v232, %v443
        %445 = vdwg.mxu0
        %446 = vmatpush.msra.mxu0 0.0
        %447 = vmatpush.msra.mxu0 0.0
        %448 = vmatpush.msra.mxu0 0.0
        %449 = vmatpush.msra.mxu0 0.0
        %450 = vmatpush.msra.mxu0 0.0
        %451 = vmatpush.msra.mxu0 0.0
        %452 = vmatpush.msra.mxu0 0.0
        %453 = vmatpush.msra.mxu0 0.0
        %454 = vmatpush.msra.mxu0 0.0
        %455 = vmatpush.msra.mxu0 0.0
        %456 = vmatpush.msra.mxu0 0.0
        %457 = vmatpush.msra.mxu0 0.0
        %458 = vmatpush.msra.mxu0 0.0
        %459 = vmatpush.msra.mxu0 0.0
        %460 = vmatpush.msra.mxu0 0.0
        %461 = vmatpush.msra.mxu0 %v288
        %462 = vmatmul.f32.gmra.mxu0 %v271
        %v463 = vpop.f32.mrf.mxu0
        %v464 = vadd.f32 %v232, %v463
        %465 = vdwg.mxu0
        %466 = vmatpush.msra.mxu0 0.0
        %467 = vmatpush.msra.mxu0 0.0
        %468 = vmatpush.msra.mxu0 0.0
        %469 = vmatpush.msra.mxu0 0.0
        %470 = vmatpush.msra.mxu0 0.0
        %471 = vmatpush.msra.mxu0 0.0
        %472 = vmatpush.msra.mxu0 0.0
        %473 = vmatpush.msra.mxu0 0.0
        %474 = vmatpush.msra.mxu0 0.0
        %475 = vmatpush.msra.mxu0 0.0
        %476 = vmatpush.msra.mxu0 0.0
        %477 = vmatpush.msra.mxu0 0.0
        %478 = vmatpush.msra.mxu0 0.0
        %479 = vmatpush.msra.mxu0 0.0
        %480 = vmatpush.msra.mxu0 0.0
        %481 = vmatpush.msra.mxu0 %v290
        %482 = vmatmul.f32.gmra.mxu0 %v271
        %v483 = vpop.f32.mrf.mxu0
        %v484 = vadd.f32 %v232, %v483
        %485 = vdwg.mxu0
        %486 = vmatpush.msra.mxu0 0.0
        %487 = vmatpush.msra.mxu0 0.0
        %488 = vmatpush.msra.mxu0 0.0
        %489 = vmatpush.msra.mxu0 0.0
        %490 = vmatpush.msra.mxu0 0.0
        %491 = vmatpush.msra.mxu0 0.0
        %492 = vmatpush.msra.mxu0 0.0
        %493 = vmatpush.msra.mxu0 0.0
        %494 = vmatpush.msra.mxu0 0.0
        %495 = vmatpush.msra.mxu0 0.0
        %496 = vmatpush.msra.mxu0 0.0
        %497 = vmatpush.msra.mxu0 0.0
        %498 = vmatpush.msra.mxu0 0.0
        %499 = vmatpush.msra.mxu0 0.0
        %500 = vmatpush.msra.mxu0 0.0
        %501 = vmatpush.msra.mxu0 %v292
        %502 = vmatmul.f32.gmra.mxu0 %v271
        %v503 = vpop.f32.mrf.mxu0
        %v504 = vadd.f32 %v232, %v503
        %505 = vdwg.mxu0
        %506 = vmatpush.msra.mxu0 0.0
        %507 = vmatpush.msra.mxu0 0.0
        %508 = vmatpush.msra.mxu0 0.0
        %509 = vmatpush.msra.mxu0 0.0
        %510 = vmatpush.msra.mxu0 0.0
        %511 = vmatpush.msra.mxu0 0.0
        %512 = vmatpush.msra.mxu0 0.0
        %513 = vmatpush.msra.mxu0 0.0
        %514 = vmatpush.msra.mxu0 0.0
        %515 = vmatpush.msra.mxu0 0.0
        %516 = vmatpush.msra.mxu0 0.0
        %517 = vmatpush.msra.mxu0 0.0
        %518 = vmatpush.msra.mxu0 0.0
        %519 = vmatpush.msra.mxu0 0.0
        %520 = vmatpush.msra.mxu0 0.0
        %521 = vmatpush.msra.mxu0 %v294
        %522 = vmatmul.f32.gmra.mxu0 %v271
        %v523 = vpop.f32.mrf.mxu0
        %v524 = vadd.f32 %v232, %v523
        %525 = vdwg.mxu0
        %526 = vmatpush.msra.mxu0 0.0
        %527 = vmatpush.msra.mxu0 0.0
        %528 = vmatpush.msra.mxu0 0.0
        %529 = vmatpush.msra.mxu0 0.0
        %530 = vmatpush.msra.mxu0 0.0
        %531 = vmatpush.msra.mxu0 0.0
        %532 = vmatpush.msra.mxu0 0.0
        %533 = vmatpush.msra.mxu0 0.0
        %534 = vmatpush.msra.mxu0 0.0
        %535 = vmatpush.msra.mxu0 0.0
        %536 = vmatpush.msra.mxu0 0.0
        %537 = vmatpush.msra.mxu0 0.0
        %538 = vmatpush.msra.mxu0 0.0
        %539 = vmatpush.msra.mxu0 0.0
        %540 = vmatpush.msra.mxu0 0.0
        %541 = vmatpush.msra.mxu0 %v296
        %542 = vmatmul.f32.gmra.mxu0 %v271
        %v543 = vpop.f32.mrf.mxu0
        %v544 = vadd.f32 %v232, %v543
        %545 = vdwg.mxu0
        %546 = vmatpush.msra.mxu0 0.0
        %547 = vmatpush.msra.mxu0 0.0
        %548 = vmatpush.msra.mxu0 0.0
        %549 = vmatpush.msra.mxu0 0.0
        %550 = vmatpush.msra.mxu0 0.0
        %551 = vmatpush.msra.mxu0 0.0
        %552 = vmatpush.msra.mxu0 0.0
        %553 = vmatpush.msra.mxu0 0.0
        %554 = vmatpush.msra.mxu0 0.0
        %555 = vmatpush.msra.mxu0 0.0
        %556 = vmatpush.msra.mxu0 0.0
        %557 = vmatpush.msra.mxu0 0.0
        %558 = vmatpush.msra.mxu0 0.0
        %559 = vmatpush.msra.mxu0 0.0
        %560 = vmatpush.msra.mxu0 0.0
        %561 = vmatpush.msra.mxu0 %v298
        %562 = vmatmul.f32.gmra.mxu0 %v271
        %v563 = vpop.f32.mrf.mxu0
        %v564 = vadd.f32 %v232, %v563
        %565 = vdwg.mxu0
        %566 = vmatpush.msra.mxu0 0.0
        %567 = vmatpush.msra.mxu0 0.0
        %568 = vmatpush.msra.mxu0 0.0
        %569 = vmatpush.msra.mxu0 0.0
        %570 = vmatpush.msra.mxu0 0.0
        %571 = vmatpush.msra.mxu0 0.0
        %572 = vmatpush.msra.mxu0 0.0
        %573 = vmatpush.msra.mxu0 0.0
        %574 = vmatpush.msra.mxu0 0.0
        %575 = vmatpush.msra.mxu0 0.0
        %576 = vmatpush.msra.mxu0 0.0
        %577 = vmatpush.msra.mxu0 0.0
        %578 = vmatpush.msra.mxu0 0.0
        %579 = vmatpush.msra.mxu0 0.0
        %580 = vmatpush.msra.mxu0 0.0
        %581 = vmatpush.msra.mxu0 %v300
        %582 = vmatmul.f32.gmra.mxu0 %v271
        %v583 = vpop.f32.mrf.mxu0
        %v584 = vadd.f32 %v232, %v583
        %585 = vdwg.mxu0
        %586 = vmatpush.msra.mxu0 0.0
        %587 = vmatpush.msra.mxu0 0.0
        %588 = vmatpush.msra.mxu0 0.0
        %589 = vmatpush.msra.mxu0 0.0
        %590 = vmatpush.msra.mxu0 0.0
        %591 = vmatpush.msra.mxu0 0.0
        %592 = vmatpush.msra.mxu0 0.0
        %593 = vmatpush.msra.mxu0 0.0
        %594 = vmatpush.msra.mxu0 0.0
        %595 = vmatpush.msra.mxu0 0.0
        %596 = vmatpush.msra.mxu0 0.0
        %597 = vmatpush.msra.mxu0 0.0
        %598 = vmatpush.msra.mxu0 0.0
        %599 = vmatpush.msra.mxu0 0.0
        %600 = vmatpush.msra.mxu0 0.0
        %601 = vmatpush.msra.mxu0 %v302
        %602 = vmatmul.f32.gmra.mxu0 %v271
        %v603 = vpop.f32.mrf.mxu0
        %v604 = vadd.f32 %v232, %v603
        %605 = vdwg.mxu0
        %606 = vmatpush.msra.mxu0 0.0
        %607 = vmatpush.msra.mxu0 0.0
        %608 = vmatpush.msra.mxu0 0.0
        %609 = vmatpush.msra.mxu0 0.0
        %610 = vmatpush.msra.mxu0 0.0
        %611 = vmatpush.msra.mxu0 0.0
        %612 = vmatpush.msra.mxu0 0.0
        %613 = vmatpush.msra.mxu0 0.0
        %614 = vmatpush.msra.mxu0 0.0
        %615 = vmatpush.msra.mxu0 0.0
        %616 = vmatpush.msra.mxu0 0.0
        %617 = vmatpush.msra.mxu0 0.0
        %618 = vmatpush.msra.mxu0 0.0
        %619 = vmatpush.msra.mxu0 0.0
        %620 = vmatpush.msra.mxu0 0.0
        %621 = vmatpush.msra.mxu0 %v304
        %622 = vmatmul.f32.gmra.mxu0 %v271
        %v623 = vpop.f32.mrf.mxu0
        %v624 = vadd.f32 %v232, %v623
        %625 = vdwg.mxu0
        %v642 = vrot.slane %v344, 4
        %v643 = vrot.slane %v384, 4
        %v644 = vrot.slane %v424, 4
        %v645 = vrot.slane %v464, 4
        %v646 = vrot.slane %v504, 4
        %v647 = vrot.slane %v544, 4
        %v648 = vrot.slane %v584, 4
        %v649 = vrot.slane %v624, 4
        %v650 = vsel %vm273, %v324, %v642
        %v651 = vsel %vm273, %v364, %v643
        %v652 = vsel %vm273, %v404, %v644
        %v653 = vsel %vm273, %v444, %v645
        %v654 = vsel %vm273, %v484, %v646
        %v655 = vsel %vm273, %v524, %v647
        %v656 = vsel %vm273, %v564, %v648
        %v657 = vsel %vm273, %v604, %v649
        %666 = vst [vmem:[%s217] sm:$0x77] %v650
        %667 = vst [vmem:[%s217 + $0x8] sm:$0x77] %v651
        %668 = vst [vmem:[%s217 + $0x10] sm:$0x77] %v652
        %669 = vst [vmem:[%s217 + $0x18] sm:$0x77] %v653
        %670 = vst [vmem:[%s217 + $0x20] sm:$0x77] %v654
        %671 = vst [vmem:[%s217 + $0x28] sm:$0x77] %v655
        %672 = vst [vmem:[%s217 + $0x30] sm:$0x77] %v656
        %673 = vst [vmem:[%s217 + $0x38] sm:$0x77] %v657
        %s674 = smul.u32 16, %s22
        %p675 = scmp.lt.s32.totalorder %s21, 1
        %s676 = scalar_select %p675, %s21, 1
        %p677 = scmp.lt.s32.totalorder %s674, 15
        %s678 = scalar_select %p677, %s674, 15
        %s679 = smul.addr %s676, 16
        %s680 = sadd.s32 %s678, %s679
        %s681 = smul.addr %s680, 4
        %s682 = scalar_lea.vmem %s3, %s681
        // Predicated region
        $region37: #{tpu_custom_call.1} parent=31 // pred_check
          %p683 = pneg %p119
        $region38: #{tpu_custom_call.1} parent=31 // pred_check_branch
          %685 = sbr.rel (%p683) target = $region40
        $region39: #{tpu_custom_call.1} parent=31 // pred_region
          %s686 = smul.u32 16, %s22
        $region40: #{tpu_custom_call.1} parent=31 // pred_fallthru
          _
      $region32: #{tpu_custom_call.1} parent=5 // pred_fallthru
        _
      %p687 = scmp.le.s32.totalorder 2, %s12
      // Predicated region
      $region41: #{tpu_custom_call.1} parent=5 // pred_check
        %p688 = pneg %p687
      $region42: #{tpu_custom_call.1} parent=5 // pred_check_branch
        %690 = sbr.rel (%p688) target = $region44
      $region43: #{tpu_custom_call.1} parent=5 // pred_region
        %s691 = ssub.s32 %s12, 2
        // Predicated region
        $region45: #{tpu_custom_call.1} parent=43 // pred_check
          %p692 = pneg %p125
        $region46: #{tpu_custom_call.1} parent=43 // pred_check_branch
          %694 = sbr.rel (%p692) target = $region48
        $region47: #{tpu_custom_call.1} parent=43 // pred_region
          %s695 = smul.u32 16, %s24
          %p696 = scmp.lt.s32.totalorder %s23, 1
          %s697 = scalar_select %p696, %s23, 1
          %p698 = scmp.lt.s32.totalorder %s695, 15
          %s699 = scalar_select %p698, %s695, 15
          %s700 = smul.addr %s697, 16
          %s701 = sadd.s32 %s699, %s700
          %s702 = smul.addr %s701, 4
          %s703 = scalar_lea.vmem %s3, %s702
        $region48: #{tpu_custom_call.1} parent=43 // pred_fallthru
          _
      $region44: #{tpu_custom_call.1} parent=5 // pred_fallthru
        _
    $region6: #{tpu_custom_call.1} parent=1 // loop_footer
      %s16 = sadd.s32 1, %s12
    $region7: #{tpu_custom_call.1} parent=1 // loop_footer_branch
      %11 = sbr.rel target = $region3
    $region8: #{tpu_custom_call.1} parent=1 // loop_exit
      _
    %704 = vsyncpa [#allocation3], 1
    %s705 = scalar_lea.sflag [#allocation3], 1
    %706 = vsyncpa %s705, 1

</llo_original>
